<compile_context>
chip_gen: v5e
topology: v5e:2x2
jax: 0.10.0
libtpu: 0.0.40
codegen_flags: <defaults>
</compile_context>

<pallas_src>
import jax
import jax.numpy as jnp
from jax.experimental import pallas as pl
from jax.experimental.pallas import tpu as pltpu

L = 16          # sequence length (fc1 in-features 16*8 forces L=16)
C = 16          # conv out channels
P = L // 2      # pooled length = 8
F = C * P       # flattened features = 128
H = 128         # fc1 hidden
O = 10          # classes
OPAD = 128      # lane-padded output width


def cnn1d_kernel(x_ref, we_ref, wo_ref, bcp_ref, w1t_ref, b1_ref, w2t_ref, b2_ref,
                 out_ref):
    x = x_ref[...]                                                   # (bt, 16) f32

    # conv + maxpool + flatten as two MXU matmuls + vmax  (relu(max) == max(relu))
    even = jnp.dot(x, we_ref[...], preferred_element_type=jnp.float32) + bcp_ref[...]
    odd = jnp.dot(x, wo_ref[...], preferred_element_type=jnp.float32) + bcp_ref[...]
    flat = jnp.maximum(jnp.maximum(even, odd), 0.0)                  # (bt, 128)

    # fc1 + ReLU
    h = jnp.dot(flat, w1t_ref[...], preferred_element_type=jnp.float32) + b1_ref[...]
    h = jnp.maximum(h, 0.0)                                          # (bt, 128)

    # fc2 (lane-padded to 128; real logits live in columns 0..9)
    out = jnp.dot(h, w2t_ref[...], preferred_element_type=jnp.float32) + b2_ref[...]
    out_ref[...] = out.astype(out_ref.dtype)                         # (bt, 128)


def _make_conv_pool_mats(conv_w, conv_b):
    """Build banded matrices so x @ W_{even,odd} gives conv outputs at even/odd
    positions, already in PyTorch flatten order j = c*8 + m."""
    w = conv_w[:, 0, :].astype(jnp.float32)                          # (C, 3)
    l = jnp.arange(L)[:, None, None]                                 # (L,1,1)
    m = jnp.arange(P)[None, :, None]                                 # (1,P,1)
    k = jnp.arange(3)[None, None, :]                                 # (1,1,3)
    # conv[b,c,l_out] = sum_k w[c,k] * x[b, l_out + k - 1]  (zero-padded outside)
    sel_even = (l == 2 * m - 1 + k).astype(jnp.float32)              # l_out = 2m
    sel_odd = (l == 2 * m + k).astype(jnp.float32)                   # l_out = 2m+1
    w_even = jnp.einsum("lmk,ck->lcm", sel_even, w).reshape(L, F)    # (16, 128)
    w_odd = jnp.einsum("lmk,ck->lcm", sel_odd, w).reshape(L, F)      # (16, 128)
    b_cp = jnp.repeat(conv_b.astype(jnp.float32), P)[None, :]        # (1, 128), j=c*8+m
    return w_even, w_odd, b_cp


def cnn1d_forward(x, params, *, b_tile_max=256):
    """x: (B, 1, 16) float32 (PyTorch NCL). Returns (B, 10)."""
    B = x.shape[0]
    x2d = x[:, 0, :].astype(jnp.float32)                             # (B, 16)

    # Batch tile: multiple of 8, capped at b_tile_max (VMEM-safe on v7x 64 MiB).
    bt = min(b_tile_max, max(8, ((B + 7) // 8) * 8))
    b_pad = ((B + bt - 1) // bt) * bt
    if b_pad != B:
        x2d = jnp.pad(x2d, ((0, b_pad - B), (0, 0)))

    w_even, w_odd, b_cp = _make_conv_pool_mats(params["conv_w"], params["conv_b"])

    w1t = params["fc1_w"].astype(jnp.float32).T                      # (128, 128)
    b1 = params["fc1_b"].astype(jnp.float32)[None, :]                # (1, 128)

    # Lane-pad fc2 to 128 output columns (zero cols 10..127).
    w2t = jnp.zeros((H, OPAD), jnp.float32).at[:, :O].set(
        params["fc2_w"].astype(jnp.float32).T)                       # (128, 128)
    b2 = jnp.zeros((1, OPAD), jnp.float32).at[:, :O].set(
        params["fc2_b"].astype(jnp.float32)[None, :])                # (1, 128)

    out_pad = pl.pallas_call(
        cnn1d_kernel,
        out_shape=jax.ShapeDtypeStruct((b_pad, OPAD), jnp.float32),
        grid=(b_pad // bt,),
        in_specs=[
            pl.BlockSpec((bt, L), lambda i: (i, 0)),      # x tile
            pl.BlockSpec((L, F), lambda i: (0, 0)),       # W_even (resident)
            pl.BlockSpec((L, F), lambda i: (0, 0)),       # W_odd  (resident)
            pl.BlockSpec((1, F), lambda i: (0, 0)),       # conv bias per feature
            pl.BlockSpec((F, H), lambda i: (0, 0)),       # fc1 W^T
            pl.BlockSpec((1, H), lambda i: (0, 0)),       # fc1 b
            pl.BlockSpec((H, OPAD), lambda i: (0, 0)),    # fc2 W^T (lane-padded)
            pl.BlockSpec((1, OPAD), lambda i: (0, 0)),    # fc2 b   (lane-padded)
        ],
        out_specs=pl.BlockSpec((bt, OPAD), lambda i: (i, 0)),
        compiler_params=pltpu.CompilerParams(
            dimension_semantics=("parallel",)),
    )(x2d, w_even, w_odd, b_cp, w1t, b1, w2t, b2)

    return out_pad[:B, :O]


def reference_forward(x, params):
    """Pure-JAX reference mirroring the PyTorch forward exactly (NCL layout)."""
    B = x.shape[0]
    xpad = jnp.pad(x, ((0, 0), (0, 0), (1, 1)))                      # (B, 1, 18)
    patches = jnp.stack([xpad[:, 0, k:k + L] for k in range(3)], axis=-1)  # (B, 16, 3)
    conv = jnp.einsum("blk,ck->bcl", patches, params["conv_w"][:, 0, :])
    conv = conv + params["conv_b"][None, :, None]                    # (B, 16, 16)
    conv = jnp.maximum(conv, 0.0)
    pooled = jnp.max(conv.reshape(B, C, P, 2), axis=-1)              # (B, 16, 8)
    flat = pooled.reshape(B, C * P)                                  # PyTorch .view order
    h = jnp.maximum(flat @ params["fc1_w"].T + params["fc1_b"], 0.0)
    return h @ params["fc2_w"].T + params["fc2_b"]


if __name__ == "__main__":
    key = jax.random.PRNGKey(0)
    ks = jax.random.split(key, 8)
    params = dict(
        conv_w=jax.random.normal(ks[1], (C, 1, 3), dtype=jnp.float32) * 0.1,
        conv_b=jax.random.normal(ks[2], (C,), dtype=jnp.float32) * 0.1,
        fc1_w=jax.random.normal(ks[3], (H, F), dtype=jnp.float32) * 0.1,
        fc1_b=jax.random.normal(ks[4], (H,), dtype=jnp.float32) * 0.1,
        fc2_w=jax.random.normal(ks[5], (O, H), dtype=jnp.float32) * 0.1,
        fc2_b=jax.random.normal(ks[6], (O,), dtype=jnp.float32) * 0.1,
    )

    # Primary small-shape check (batch=2).
    B = 2
    x = jax.random.normal(ks[0], (B, 1, L), dtype=jnp.float32)
    out = jax.block_until_ready(cnn1d_forward(x, params))
    ref = jax.block_until_ready(reference_forward(x, params))
    assert out.shape == (B, O), out.shape
    if not jnp.allclose(out, ref, atol=1e-4, rtol=1e-4):
        raise AssertionError(f"mismatch: max abs err {jnp.max(jnp.abs(out - ref))}")

    # Secondary check exercising multiple grid tiles + batch padding.
    B2 = 300
    x2 = jax.random.normal(ks[7], (B2, 1, L), dtype=jnp.float32)
    out2 = jax.block_until_ready(cnn1d_forward(x2, params))
    ref2 = jax.block_until_ready(reference_forward(x2, params))
    if not jnp.allclose(out2, ref2, atol=1e-4, rtol=1e-4):
        raise AssertionError(f"tiled mismatch: max abs err {jnp.max(jnp.abs(out2 - ref2))}")

    print("KERNEL_OK")
</pallas_src>

<mosaic_0001>
module attributes {stable_mosaic.version = 11 : i64} {
  func.func @cnn1d_kernel(%arg0: i32, %arg1: memref<8x16xf32, #tpu.memory_space<vmem>>, %arg2: memref<16x128xf32, #tpu.memory_space<vmem>>, %arg3: memref<16x128xf32, #tpu.memory_space<vmem>>, %arg4: memref<1x128xf32, #tpu.memory_space<vmem>>, %arg5: memref<128x128xf32, #tpu.memory_space<vmem>>, %arg6: memref<1x128xf32, #tpu.memory_space<vmem>>, %arg7: memref<128x128xf32, #tpu.memory_space<vmem>>, %arg8: memref<1x128xf32, #tpu.memory_space<vmem>>, %arg9: memref<8x128xf32, #tpu.memory_space<vmem>>) attributes {dimension_semantics = [#tpu.dimension_semantics<parallel>], iteration_bounds = array<i64: 1>, scalar_prefetch = 0 : i64, scratch_operands = 0 : i64, tpu.core_type = #tpu.core_type<tc>, window_params = [{transform_indices = @transform_0, window_bounds = array<i64: 8, 16>}, {pipeline_mode = #tpu.pipeline_mode<synchronous>, transform_indices = @transform_1, window_bounds = array<i64: 16, 128>}, {pipeline_mode = #tpu.pipeline_mode<synchronous>, transform_indices = @transform_2, window_bounds = array<i64: 16, 128>}, {pipeline_mode = #tpu.pipeline_mode<synchronous>, transform_indices = @transform_3, window_bounds = array<i64: 1, 128>}, {pipeline_mode = #tpu.pipeline_mode<synchronous>, transform_indices = @transform_4, window_bounds = array<i64: 128, 128>}, {pipeline_mode = #tpu.pipeline_mode<synchronous>, transform_indices = @transform_5, window_bounds = array<i64: 1, 128>}, {pipeline_mode = #tpu.pipeline_mode<synchronous>, transform_indices = @transform_6, window_bounds = array<i64: 128, 128>}, {pipeline_mode = #tpu.pipeline_mode<synchronous>, transform_indices = @transform_7, window_bounds = array<i64: 1, 128>}, {transform_indices = @transform_8, window_bounds = array<i64: 8, 128>}]} {
    %c0 = arith.constant 0 : index
    %c0_0 = arith.constant 0 : index
    %0 = vector.load %arg1[%c0, %c0_0] : memref<8x16xf32, #tpu.memory_space<vmem>>, vector<8x16xf32>
    %c0_1 = arith.constant 0 : index
    %c0_2 = arith.constant 0 : index
    %1 = vector.load %arg2[%c0_1, %c0_2] : memref<16x128xf32, #tpu.memory_space<vmem>>, vector<16x128xf32>
    %cst = arith.constant dense<0.000000e+00> : vector<8x128xf32>
    %2 = tpu.matmul %0, %1, %cst {dimension_numbers = #tpu.dot_dimension_numbers<[1], [0], [0], [1], [0, 0, 1, 1], [], []>} : vector<8x16xf32>, vector<16x128xf32>, vector<8x128xf32> -> vector<8x128xf32>
    %c0_3 = arith.constant 0 : index
    %c0_4 = arith.constant 0 : index
    %3 = vector.load %arg4[%c0_3, %c0_4] : memref<1x128xf32, #tpu.memory_space<vmem>>, vector<1x128xf32>
    %4 = vector.broadcast %3 : vector<1x128xf32> to vector<8x128xf32>
    %5 = arith.addf %2, %4 : vector<8x128xf32>
    %c0_5 = arith.constant 0 : index
    %c0_6 = arith.constant 0 : index
    %6 = vector.load %arg3[%c0_5, %c0_6] : memref<16x128xf32, #tpu.memory_space<vmem>>, vector<16x128xf32>
    %cst_7 = arith.constant dense<0.000000e+00> : vector<8x128xf32>
    %7 = tpu.matmul %0, %6, %cst_7 {dimension_numbers = #tpu.dot_dimension_numbers<[1], [0], [0], [1], [0, 0, 1, 1], [], []>} : vector<8x16xf32>, vector<16x128xf32>, vector<8x128xf32> -> vector<8x128xf32>
    %c0_8 = arith.constant 0 : index
    %c0_9 = arith.constant 0 : index
    %8 = vector.load %arg4[%c0_8, %c0_9] : memref<1x128xf32, #tpu.memory_space<vmem>>, vector<1x128xf32>
    %9 = vector.broadcast %8 : vector<1x128xf32> to vector<8x128xf32>
    %10 = arith.addf %7, %9 : vector<8x128xf32>
    %11 = arith.maximumf %5, %10 : vector<8x128xf32>
    %cst_10 = arith.constant 0.000000e+00 : f32
    %12 = vector.broadcast %cst_10 : f32 to vector<8x128xf32>
    %13 = arith.maximumf %11, %12 : vector<8x128xf32>
    %c0_11 = arith.constant 0 : index
    %c0_12 = arith.constant 0 : index
    %14 = vector.load %arg5[%c0_11, %c0_12] : memref<128x128xf32, #tpu.memory_space<vmem>>, vector<128x128xf32>
    %cst_13 = arith.constant dense<0.000000e+00> : vector<8x128xf32>
    %15 = tpu.matmul %13, %14, %cst_13 {dimension_numbers = #tpu.dot_dimension_numbers<[1], [0], [0], [1], [0, 0, 1, 1], [], []>} : vector<8x128xf32>, vector<128x128xf32>, vector<8x128xf32> -> vector<8x128xf32>
    %c0_14 = arith.constant 0 : index
    %c0_15 = arith.constant 0 : index
    %16 = vector.load %arg6[%c0_14, %c0_15] : memref<1x128xf32, #tpu.memory_space<vmem>>, vector<1x128xf32>
    %17 = vector.broadcast %16 : vector<1x128xf32> to vector<8x128xf32>
    %18 = arith.addf %15, %17 : vector<8x128xf32>
    %cst_16 = arith.constant 0.000000e+00 : f32
    %19 = vector.broadcast %cst_16 : f32 to vector<8x128xf32>
    %20 = arith.maximumf %18, %19 : vector<8x128xf32>
    %c0_17 = arith.constant 0 : index
    %c0_18 = arith.constant 0 : index
    %21 = vector.load %arg7[%c0_17, %c0_18] : memref<128x128xf32, #tpu.memory_space<vmem>>, vector<128x128xf32>
    %cst_19 = arith.constant dense<0.000000e+00> : vector<8x128xf32>
    %22 = tpu.matmul %20, %21, %cst_19 {dimension_numbers = #tpu.dot_dimension_numbers<[1], [0], [0], [1], [0, 0, 1, 1], [], []>} : vector<8x128xf32>, vector<128x128xf32>, vector<8x128xf32> -> vector<8x128xf32>
    %c0_20 = arith.constant 0 : index
    %c0_21 = arith.constant 0 : index
    %23 = vector.load %arg8[%c0_20, %c0_21] : memref<1x128xf32, #tpu.memory_space<vmem>>, vector<1x128xf32>
    %24 = vector.broadcast %23 : vector<1x128xf32> to vector<8x128xf32>
    %25 = arith.addf %22, %24 : vector<8x128xf32>
    %c0_22 = arith.constant 0 : index
    %c0_23 = arith.constant 0 : index
    %26 = vector.load %arg9[%c0_22, %c0_23] : memref<8x128xf32, #tpu.memory_space<vmem>>, vector<8x128xf32>
    tpu.vector_store %arg9[%c0_22, %c0_23], %25 {strides = array<i32>} : memref<8x128xf32, #tpu.memory_space<vmem>>, vector<8x128xf32>,
    return
  }
  func.func @transform_0(%arg0: i32) -> (i32, i32) {
    %c0_i32 = arith.constant 0 : i32
    %c0_i32_0 = arith.constant 0 : i32
    return %arg0, %c0_i32 : i32, i32
  }
  func.func @transform_1(%arg0: i32) -> (i32, i32) {
    %c0_i32 = arith.constant 0 : i32
    %c0_i32_0 = arith.constant 0 : i32
    %c0_i32_1 = arith.constant 0 : i32
    return %c0_i32, %c0_i32_0 : i32, i32
  }
  func.func @transform_2(%arg0: i32) -> (i32, i32) {
    %c0_i32 = arith.constant 0 : i32
    %c0_i32_0 = arith.constant 0 : i32
    %c0_i32_1 = arith.constant 0 : i32
    return %c0_i32, %c0_i32_0 : i32, i32
  }
  func.func @transform_3(%arg0: i32) -> (i32, i32) {
    %c0_i32 = arith.constant 0 : i32
    %c0_i32_0 = arith.constant 0 : i32
    %c0_i32_1 = arith.constant 0 : i32
    return %c0_i32, %c0_i32_0 : i32, i32
  }
  func.func @transform_4(%arg0: i32) -> (i32, i32) {
    %c0_i32 = arith.constant 0 : i32
    %c0_i32_0 = arith.constant 0 : i32
    %c0_i32_1 = arith.constant 0 : i32
    return %c0_i32, %c0_i32_0 : i32, i32
  }
  func.func @transform_5(%arg0: i32) -> (i32, i32) {
    %c0_i32 = arith.constant 0 : i32
    %c0_i32_0 = arith.constant 0 : i32
    %c0_i32_1 = arith.constant 0 : i32
    return %c0_i32, %c0_i32_0 : i32, i32
  }
  func.func @transform_6(%arg0: i32) -> (i32, i32) {
    %c0_i32 = arith.constant 0 : i32
    %c0_i32_0 = arith.constant 0 : i32
    %c0_i32_1 = arith.constant 0 : i32
    return %c0_i32, %c0_i32_0 : i32, i32
  }
  func.func @transform_7(%arg0: i32) -> (i32, i32) {
    %c0_i32 = arith.constant 0 : i32
    %c0_i32_0 = arith.constant 0 : i32
    %c0_i32_1 = arith.constant 0 : i32
    return %c0_i32, %c0_i32_0 : i32, i32
  }
  func.func @transform_8(%arg0: i32) -> (i32, i32) {
    %c0_i32 = arith.constant 0 : i32
    %c0_i32_0 = arith.constant 0 : i32
    return %arg0, %c0_i32 : i32, i32
  }
}

</mosaic_0001>

<llo_original>
// kernel: tpu_custom_call.1
$region0: #{tpu_custom_call.1}
  #allocation0 [shape = 'u32[]', space=smem, size = 0x4, offset = 0x4, fixed_abs, tag = 'smem constant byte address 0x4 - core index']
  #allocation1 [shape = 'u32[72,128]{1,0:T(1,128)}', space=vmem, size = 0x9000, scoped, tag = 'internal scratch']
  %s0 = inlined_call_operand.hbm [shape: f32[8,16], index: 0, kind: input, shape index: {}]
  %s1 = inlined_call_operand.hbm [shape: f32[16,128], index: 1, kind: input, shape index: {}]
  %s2 = inlined_call_operand.hbm [shape: f32[16,128], index: 2, kind: input, shape index: {}]
  %s3 = inlined_call_operand.vmem [shape: f32[1,128], index: 3, kind: input, shape index: {}]
  %s4 = inlined_call_operand.hbm [shape: f32[128,128], index: 4, kind: input, shape index: {}]
  %s5 = inlined_call_operand.vmem [shape: f32[1,128], index: 5, kind: input, shape index: {}]
  %s6 = inlined_call_operand.hbm [shape: f32[128,128], index: 6, kind: input, shape index: {}]
  %s7 = inlined_call_operand.vmem [shape: f32[1,128], index: 7, kind: input, shape index: {}]
  %s8 = inlined_call_operand.hbm [shape: f32[8,128], index: 8, kind: output, shape index: {}]
  %s9 = sld [smem:[#allocation0]]
  $region62: #{tpu_custom_call.1} parent=0
    _
  %s11 = ssub.s32 1, %s9
  %s12 = scalar_select 0, %s11, %s9
  $region1: #{tpu_custom_call.1} parent=0
    #allocation2 [shape = 'u8[4096]{0}', space=vmem, size = 0x1000, scoped, tag = 'input window, operand 0, single buffered']
    #allocation3 [shape = 's32[1]{0}', space=sflag, size = 0x4, scoped, tag = 'scoped memory for tpu_custom_call.1']
    #allocation4 [shape = 's32[1]{0}', space=sflag, size = 0x4, scoped, tag = 'scoped memory for tpu_custom_call.1']
    #allocation5 [shape = 'u8[8192]{0}', space=vmem, size = 0x2000, scoped, tag = 'input window, operand 1, single buffered']
    #allocation6 [shape = 's32[1]{0}', space=sflag, size = 0x4, scoped, tag = 'scoped memory for tpu_custom_call.1']
    #allocation7 [shape = 'u8[8192]{0}', space=vmem, size = 0x2000, scoped, tag = 'input window, operand 2, single buffered']
    #allocation8 [shape = 'u8[65536]{0}', space=vmem, size = 0x10000, scoped, tag = 'input window, operand 4, single buffered']
    #allocation9 [shape = 's32[1]{0}', space=sflag, size = 0x4, scoped, tag = 'scoped memory for tpu_custom_call.1']
    #allocation10 [shape = 'u8[65536]{0}', space=vmem, size = 0x10000, scoped, tag = 'input window, operand 6, single buffered']
    #allocation11 [shape = 'u8[4096]{0}', space=vmem, size = 0x1000, scoped, tag = 'output window, operand 0, single buffered']
    %13 = vsyncpa [#allocation3], 0
    %14 = vsyncpa [#allocation6], 0
    %15 = vsyncpa [#allocation9], 0
    %16 = vsyncpa [#allocation4], 0
    // Predicated region
    $region2: #{tpu_custom_call.1} parent=1 // pred_check
      _
    $region3: #{tpu_custom_call.1} parent=1 // pred_check_branch
      %18 = sbr.rel (0) target = $region5
    $region4: #{tpu_custom_call.1} parent=1 // pred_region
      %20 = vsyncadd [#allocation3], 0
      %s22 = sshll.u32 %s0, 4
      %s23 = int_to_ptr.hbm [resolvable:$true] %s22
      %s24 = sshll.u32 [#allocation2], 4
      %s25 = int_to_ptr.vmem [resolvable:$true] %s24
      %27 = dma.hbm_to_vmem [thread:$0]  %s23, 128, %s25, [#allocation3]
    $region5: #{tpu_custom_call.1} parent=1 // pred_fallthru
      _
    // Predicated region
    $region6: #{tpu_custom_call.1} parent=1 // pred_check
      _
    $region7: #{tpu_custom_call.1} parent=1 // pred_check_branch
      %29 = sbr.rel (0) target = $region9
    $region8: #{tpu_custom_call.1} parent=1 // pred_region
      %31 = vsyncadd [#allocation6], 0
      %s32 = sshll.u32 %s1, 4
      %s33 = int_to_ptr.hbm [resolvable:$true] %s32
      %s34 = sshll.u32 [#allocation5], 4
      %s35 = int_to_ptr.vmem [resolvable:$true] %s34
      %40 = dma.hbm_to_vmem [thread:$0]  %s33, 256, %s35, [#allocation6], 128, 128, 8
    $region9: #{tpu_custom_call.1} parent=1 // pred_fallthru
      _
    // Predicated region
    $region10: #{tpu_custom_call.1} parent=1 // pred_check
      _
    $region11: #{tpu_custom_call.1} parent=1 // pred_check_branch
      %42 = sbr.rel (0) target = $region13
    $region12: #{tpu_custom_call.1} parent=1 // pred_region
      %44 = vsyncadd [#allocation6], 0
      %s45 = sshll.u32 %s2, 4
      %s46 = int_to_ptr.hbm [resolvable:$true] %s45
      %s47 = sshll.u32 [#allocation7], 4
      %s48 = int_to_ptr.vmem [resolvable:$true] %s47
      %53 = dma.hbm_to_vmem [thread:$0]  %s46, 256, %s48, [#allocation6], 128, 128, 8
    $region13: #{tpu_custom_call.1} parent=1 // pred_fallthru
      _
    // Predicated region
    $region14: #{tpu_custom_call.1} parent=1 // pred_check
      _
    $region15: #{tpu_custom_call.1} parent=1 // pred_check_branch
      %55 = sbr.rel (0) target = $region17
    $region16: #{tpu_custom_call.1} parent=1 // pred_region
      _
    $region17: #{tpu_custom_call.1} parent=1 // pred_fallthru
      _
    // Predicated region
    $region18: #{tpu_custom_call.1} parent=1 // pred_check
      _
    $region19: #{tpu_custom_call.1} parent=1 // pred_check_branch
      %57 = sbr.rel (0) target = $region21
    $region20: #{tpu_custom_call.1} parent=1 // pred_region
      %59 = vsyncadd [#allocation9], 0
      %s60 = sshll.u32 %s4, 4
      %s61 = int_to_ptr.hbm [resolvable:$true] %s60
      %s62 = sshll.u32 [#allocation8], 4
      %s63 = int_to_ptr.vmem [resolvable:$true] %s62
      %68 = dma.hbm_to_vmem [thread:$0]  %s61, 2048, %s63, [#allocation9], 128, 128, 8
    $region21: #{tpu_custom_call.1} parent=1 // pred_fallthru
      _
    // Predicated region
    $region22: #{tpu_custom_call.1} parent=1 // pred_check
      _
    $region23: #{tpu_custom_call.1} parent=1 // pred_check_branch
      %70 = sbr.rel (0) target = $region25
    $region24: #{tpu_custom_call.1} parent=1 // pred_region
      _
    $region25: #{tpu_custom_call.1} parent=1 // pred_fallthru
      _
    // Predicated region
    $region26: #{tpu_custom_call.1} parent=1 // pred_check
      _
    $region27: #{tpu_custom_call.1} parent=1 // pred_check_branch
      %72 = sbr.rel (0) target = $region29
    $region28: #{tpu_custom_call.1} parent=1 // pred_region
      %74 = vsyncadd [#allocation9], 0
      %s75 = sshll.u32 %s6, 4
      %s76 = int_to_ptr.hbm [resolvable:$true] %s75
      %s77 = sshll.u32 [#allocation10], 4
      %s78 = int_to_ptr.vmem [resolvable:$true] %s77
      %83 = dma.hbm_to_vmem [thread:$0]  %s76, 2048, %s78, [#allocation9], 128, 128, 8
    $region29: #{tpu_custom_call.1} parent=1 // pred_fallthru
      _
    // Predicated region
    $region30: #{tpu_custom_call.1} parent=1 // pred_check
      _
    $region31: #{tpu_custom_call.1} parent=1 // pred_check_branch
      %85 = sbr.rel (0) target = $region33
    $region32: #{tpu_custom_call.1} parent=1 // pred_region
      _
    $region33: #{tpu_custom_call.1} parent=1 // pred_fallthru
      _
    // Predicated region
    $region34: #{tpu_custom_call.1} parent=1 // pred_check
      _
    $region35: #{tpu_custom_call.1} parent=1 // pred_check_branch
      %87 = sbr.rel (0) target = $region37
    $region36: #{tpu_custom_call.1} parent=1 // pred_region
      %89 = dma.done [#allocation3], 128
    $region37: #{tpu_custom_call.1} parent=1 // pred_fallthru
      _
    // Predicated region
    $region38: #{tpu_custom_call.1} parent=1 // pred_check
      _
    $region39: #{tpu_custom_call.1} parent=1 // pred_check_branch
      %91 = sbr.rel (0) target = $region41
    $region40: #{tpu_custom_call.1} parent=1 // pred_region
      %93 = dma.done [#allocation6], 256
    $region41: #{tpu_custom_call.1} parent=1 // pred_fallthru
      _
    // Predicated region
    $region42: #{tpu_custom_call.1} parent=1 // pred_check
      _
    $region43: #{tpu_custom_call.1} parent=1 // pred_check_branch
      %95 = sbr.rel (0) target = $region45
    $region44: #{tpu_custom_call.1} parent=1 // pred_region
      %97 = dma.done [#allocation6], 256
    $region45: #{tpu_custom_call.1} parent=1 // pred_fallthru
      _
    // Predicated region
    $region46: #{tpu_custom_call.1} parent=1 // pred_check
      _
    $region47: #{tpu_custom_call.1} parent=1 // pred_check_branch
      %99 = sbr.rel (0) target = $region49
    $region48: #{tpu_custom_call.1} parent=1 // pred_region
      %101 = dma.done [#allocation9], 2048
    $region49: #{tpu_custom_call.1} parent=1 // pred_fallthru
      _
    // Predicated region
    $region50: #{tpu_custom_call.1} parent=1 // pred_check
      _
    $region51: #{tpu_custom_call.1} parent=1 // pred_check_branch
      %103 = sbr.rel (0) target = $region53
    $region52: #{tpu_custom_call.1} parent=1 // pred_region
      %105 = dma.done [#allocation9], 2048
    $region53: #{tpu_custom_call.1} parent=1 // pred_fallthru
      _
    %v106 = vld [vmem:[#allocation2] sm:$0xff]
    %v107 = vld [vmem:[#allocation5] sm:$0xff]
    %v108 = vld [vmem:[#allocation5 + $0x8] sm:$0xff]
    %v109 = vld [vmem:[%s3] sm:$0x1]
    %v111 = vperm.slane %v109, 0
    %vm113 = vcmask 130048
    %v115 = vsel %vm113, %v106, 0
    %117 = vmatpush.msra.mxu0 0.0
    %118 = vmatpush.msra.mxu0 0.0
    %119 = vmatpush.msra.mxu0 0.0
    %120 = vmatpush.msra.mxu0 0.0
    %121 = vmatpush.msra.mxu0 0.0
    %122 = vmatpush.msra.mxu0 0.0
    %123 = vmatpush.msra.mxu0 0.0
    %124 = vmatpush.msra.mxu0 0.0
    %125 = vmatpush.msra.mxu0 0.0
    %126 = vmatpush.msra.mxu0 0.0
    %127 = vmatpush.msra.mxu0 0.0
    %128 = vmatpush.msra.mxu0 0.0
    %129 = vmatpush.msra.mxu0 0.0
    %130 = vmatpush.msra.mxu0 0.0
    %131 = vmatpush.msra.mxu0 %v108
    %132 = vmatpush.msra.mxu0 %v107
    %133 = vmatmul.f32.gmra.mxu0 %v115
    %v134 = vpop.f32.mrf.mxu0
    %v135 = vadd.f32 %v111, %v134
    %136 = vdwg.mxu0
    %v137 = vld [vmem:[#allocation7] sm:$0xff]
    %v138 = vld [vmem:[#allocation7 + $0x8] sm:$0xff]
    %139 = vmatpush.msra.mxu0 0.0
    %140 = vmatpush.msra.mxu0 0.0
    %141 = vmatpush.msra.mxu0 0.0
    %142 = vmatpush.msra.mxu0 0.0
    %143 = vmatpush.msra.mxu0 0.0
    %144 = vmatpush.msra.mxu0 0.0
    %145 = vmatpush.msra.mxu0 0.0
    %146 = vmatpush.msra.mxu0 0.0
    %147 = vmatpush.msra.mxu0 0.0
    %148 = vmatpush.msra.mxu0 0.0
    %149 = vmatpush.msra.mxu0 0.0
    %150 = vmatpush.msra.mxu0 0.0
    %151 = vmatpush.msra.mxu0 0.0
    %152 = vmatpush.msra.mxu0 0.0
    %153 = vmatpush.msra.mxu0 %v138
    %154 = vmatpush.msra.mxu0 %v137
    %155 = vmatmul.f32.gmra.mxu0 %v115
    %v156 = vpop.f32.mrf.mxu0
    %v157 = vadd.f32 %v111, %v156
    %158 = vdwg.mxu0
    %v159 = vmax.f32 %v135, %v157
    %v160 = vmax.f32 %v159, 0.0
    %v161 = vld [vmem:[#allocation8] sm:$0xff]
    %v162 = vld [vmem:[#allocation8 + $0x8] sm:$0xff]
    %v163 = vld [vmem:[#allocation8 + $0x10] sm:$0xff]
    %v164 = vld [vmem:[#allocation8 + $0x18] sm:$0xff]
    %v165 = vld [vmem:[#allocation8 + $0x20] sm:$0xff]
    %v166 = vld [vmem:[#allocation8 + $0x28] sm:$0xff]
    %v167 = vld [vmem:[#allocation8 + $0x30] sm:$0xff]
    %v168 = vld [vmem:[#allocation8 + $0x38] sm:$0xff]
    %v169 = vld [vmem:[#allocation8 + $0x40] sm:$0xff]
    %v170 = vld [vmem:[#allocation8 + $0x48] sm:$0xff]
    %v171 = vld [vmem:[#allocation8 + $0x50] sm:$0xff]
    %v172 = vld [vmem:[#allocation8 + $0x58] sm:$0xff]
    %v173 = vld [vmem:[#allocation8 + $0x60] sm:$0xff]
    %v174 = vld [vmem:[#allocation8 + $0x68] sm:$0xff]
    %v175 = vld [vmem:[#allocation8 + $0x70] sm:$0xff]
    %v176 = vld [vmem:[#allocation8 + $0x78] sm:$0xff]
    %v177 = vld [vmem:[%s5] sm:$0x1]
    %v179 = vperm.slane %v177, 0
    %181 = vmatpush.msra.mxu0 %v176
    %182 = vmatpush.msra.mxu0 %v175
    %183 = vmatpush.msra.mxu0 %v174
    %184 = vmatpush.msra.mxu0 %v173
    %185 = vmatpush.msra.mxu0 %v172
    %186 = vmatpush.msra.mxu0 %v171
    %187 = vmatpush.msra.mxu0 %v170
    %188 = vmatpush.msra.mxu0 %v169
    %189 = vmatpush.msra.mxu0 %v168
    %190 = vmatpush.msra.mxu0 %v167
    %191 = vmatpush.msra.mxu0 %v166
    %192 = vmatpush.msra.mxu0 %v165
    %193 = vmatpush.msra.mxu0 %v164
    %194 = vmatpush.msra.mxu0 %v163
    %195 = vmatpush.msra.mxu0 %v162
    %196 = vmatpush.msra.mxu0 %v161
    %197 = vmatmul.f32.gmra.mxu0 %v160
    %v198 = vpop.f32.mrf.mxu0
    %v199 = vadd.f32 %v179, %v198
    %200 = vdwg.mxu0
    %v201 = vmax.f32 %v199, 0.0
    %v202 = vld [vmem:[#allocation10] sm:$0xff]
    %v203 = vld [vmem:[#allocation10 + $0x8] sm:$0xff]
    %v204 = vld [vmem:[#allocation10 + $0x10] sm:$0xff]
    %v205 = vld [vmem:[#allocation10 + $0x18] sm:$0xff]
    %v206 = vld [vmem:[#allocation10 + $0x20] sm:$0xff]
    %v207 = vld [vmem:[#allocation10 + $0x28] sm:$0xff]
    %v208 = vld [vmem:[#allocation10 + $0x30] sm:$0xff]
    %v209 = vld [vmem:[#allocation10 + $0x38] sm:$0xff]
    %v210 = vld [vmem:[#allocation10 + $0x40] sm:$0xff]
    %v211 = vld [vmem:[#allocation10 + $0x48] sm:$0xff]
    %v212 = vld [vmem:[#allocation10 + $0x50] sm:$0xff]
    %v213 = vld [vmem:[#allocation10 + $0x58] sm:$0xff]
    %v214 = vld [vmem:[#allocation10 + $0x60] sm:$0xff]
    %v215 = vld [vmem:[#allocation10 + $0x68] sm:$0xff]
    %v216 = vld [vmem:[#allocation10 + $0x70] sm:$0xff]
    %v217 = vld [vmem:[#allocation10 + $0x78] sm:$0xff]
    %v218 = vld [vmem:[%s7] sm:$0x1]
    %v220 = vperm.slane %v218, 0
    %222 = vmatpush.msra.mxu0 %v217
    %223 = vmatpush.msra.mxu0 %v216
    %224 = vmatpush.msra.mxu0 %v215
    %225 = vmatpush.msra.mxu0 %v214
    %226 = vmatpush.msra.mxu0 %v213
    %227 = vmatpush.msra.mxu0 %v212
    %228 = vmatpush.msra.mxu0 %v211
    %229 = vmatpush.msra.mxu0 %v210
    %230 = vmatpush.msra.mxu0 %v209
    %231 = vmatpush.msra.mxu0 %v208
    %232 = vmatpush.msra.mxu0 %v207
    %233 = vmatpush.msra.mxu0 %v206
    %234 = vmatpush.msra.mxu0 %v205
    %235 = vmatpush.msra.mxu0 %v204
    %236 = vmatpush.msra.mxu0 %v203
    %237 = vmatpush.msra.mxu0 %v202
    %238 = vmatmul.f32.gmra.mxu0 %v201
    %v239 = vpop.f32.mrf.mxu0
    %v240 = vadd.f32 %v220, %v239
    %241 = vdwg.mxu0
    %242 = vst [vmem:[#allocation11] sm:$0xff] %v240
    // Predicated region
    $region54: #{tpu_custom_call.1} parent=1 // pred_check
      _
    $region55: #{tpu_custom_call.1} parent=1 // pred_check_branch
      %244 = sbr.rel (0) target = $region57
    $region56: #{tpu_custom_call.1} parent=1 // pred_region
      %246 = vsyncadd [#allocation4], 0
      %s248 = sshll.u32 [#allocation11], 4
      %s249 = int_to_ptr.vmem [resolvable:$true] %s248
      %s250 = sshll.u32 %s8, 4
      %s251 = int_to_ptr.hbm [resolvable:$true] %s250
      %253 = dma.vmem_to_hbm [thread:$0]  %s249, 128, %s251, [#allocation4]
    $region57: #{tpu_custom_call.1} parent=1 // pred_fallthru
      _
    // Predicated region
    $region58: #{tpu_custom_call.1} parent=1 // pred_check
      _
    $region59: #{tpu_custom_call.1} parent=1 // pred_check_branch
      %255 = sbr.rel (0) target = $region61
    $region60: #{tpu_custom_call.1} parent=1 // pred_region
      %257 = dma.done [#allocation4], 128
    $region61: #{tpu_custom_call.1} parent=1 // pred_fallthru
      _
    %258 = vsyncpa [#allocation3], 1
    %259 = vsyncpa [#allocation6], 1
    %260 = vsyncpa [#allocation9], 1
    %261 = vsyncpa [#allocation4], 1

</llo_original>
